<compile_context>
chip_gen: v7x
topology: tpu7x:2x2x1
jax: 0.10.0
libtpu: 0.0.40
codegen_flags: <defaults>
</compile_context>

<pallas_src>
import math
import jax
import jax.numpy as jnp
from jax.experimental import pallas as pl
from jax.experimental.pallas import tpu as pltpu

_LANE = 128
_SUBLANE = 8


def _round_up(n, m):
    return ((n + m - 1) // m) * m


def _pick_tile(total, preferred):
    """Largest multiple of 128 that divides `total` and is <= preferred."""
    t = min(_round_up(preferred, _LANE), total)
    while total % t != 0:
        t -= _LANE
    return t


def _scale_noise(key, size):
    z = jax.random.normal(key, (size,), dtype=jnp.float32)
    return jnp.sign(z) * jnp.sqrt(jnp.abs(z))


def init_noisy_linear(key, in_features, out_features, std_init=0.4,
                      dtype=jnp.bfloat16):
    """Parameters + noise buffers, pre-transposed / zero-padded / bf16 for the kernel."""
    f_pad = _round_up(in_features, _LANE)
    c_pad = _round_up(out_features, _LANE)

    k_wmu, k_bmu, k_ein, k_eout, k_beps = jax.random.split(key, 5)
    mu_range = 1.0 / math.sqrt(in_features)

    weight_mu = jax.random.uniform(k_wmu, (out_features, in_features),
                                   minval=-mu_range, maxval=mu_range,
                                   dtype=jnp.float32)
    weight_sigma = jnp.full((out_features, in_features),
                            std_init / math.sqrt(in_features), jnp.float32)
    bias_mu = jax.random.uniform(k_bmu, (out_features,),
                                 minval=-mu_range, maxval=mu_range,
                                 dtype=jnp.float32)
    bias_sigma = jnp.full((out_features,),
                          std_init / math.sqrt(out_features), jnp.float32)

    # reset_noise(): factorized Gaussian epsilon buffers (fixed until re-drawn).
    eps_in = _scale_noise(k_ein, in_features)
    eps_out = _scale_noise(k_eout, out_features)
    weight_eps = jnp.outer(eps_out, eps_in)            # (out, in)
    bias_eps = _scale_noise(k_beps, out_features)      # independent draw (matches reference)

    def pad_w_t(w):   # (out, in) -> transposed + zero-padded (f_pad, c_pad)
        return (jnp.zeros((f_pad, c_pad), jnp.float32)
                .at[:in_features, :out_features].set(w.T).astype(dtype))

    def pad_b(b):     # (out,) -> (1, c_pad)
        return (jnp.zeros((1, c_pad), jnp.float32)
                .at[0, :out_features].set(b).astype(dtype))

    return {
        "in_features": in_features,
        "out_features": out_features,
        # raw f32 (PyTorch-layout) params, used only for the reference check
        "weight_mu": weight_mu, "weight_sigma": weight_sigma,
        "weight_eps": weight_eps,
        "bias_mu": bias_mu, "bias_sigma": bias_sigma, "bias_eps": bias_eps,
        # kernel-ready: transposed, lane-dense padded, bf16 (hoisted out of forward)
        "weight_mu_t": pad_w_t(weight_mu),
        "weight_sigma_t": pad_w_t(weight_sigma),
        "weight_eps_t": pad_w_t(weight_eps),
        "bias_mu_p": pad_b(bias_mu),
        "bias_sigma_p": pad_b(bias_sigma),
        "bias_eps_p": pad_b(bias_eps),
    }


def _noisy_linear_kernel(x_ref, wmu_ref, wsig_ref, weps_ref,
                         bmu_ref, bsig_ref, beps_ref, o_ref, acc_ref):
    k = pl.program_id(2)

    @pl.when(k == 0)
    def _():
        acc_ref[...] = jnp.zeros_like(acc_ref)

    # Noisy weight tile formed on the fly.  Combine in f32 (v5e has no bf16
    # VALU), downcast to bf16 right before the MXU; VPU/downcast work hides
    # under the matmul.
    w = (wmu_ref[...].astype(jnp.float32)
         + wsig_ref[...].astype(jnp.float32) * weps_ref[...].astype(jnp.float32))
    acc_ref[...] += jnp.dot(x_ref[...], w.astype(x_ref.dtype),
                            preferred_element_type=jnp.float32)

    @pl.when(k == pl.num_programs(2) - 1)
    def _():
        b = (bmu_ref[...].astype(jnp.float32)
             + bsig_ref[...].astype(jnp.float32) * beps_ref[...].astype(jnp.float32))
        o_ref[...] = (acc_ref[...] + b).astype(o_ref.dtype)


def _plain_linear_kernel(x_ref, wmu_ref, bmu_ref, o_ref, acc_ref):
    k = pl.program_id(2)

    @pl.when(k == 0)
    def _():
        acc_ref[...] = jnp.zeros_like(acc_ref)

    acc_ref[...] += jnp.dot(x_ref[...], wmu_ref[...],
                            preferred_element_type=jnp.float32)

    @pl.when(k == pl.num_programs(2) - 1)
    def _():
        o_ref[...] = (acc_ref[...] + bmu_ref[...].astype(jnp.float32)
                      ).astype(o_ref.dtype)


def _vmem_limit_bytes(tile_b, tile_k, tile_n, n_w, n_bias, w_item, x_item):
    x_b = 2 * tile_b * tile_k * x_item                 # double-buffered x tile
    w_b = n_w * 2 * tile_k * tile_n * w_item           # double-buffered weight tiles
    b_b = n_bias * 2 * _SUBLANE * tile_n * w_item      # bias tiles (sublane padded)
    o_b = 2 * tile_b * tile_n * 4                      # f32 output tile
    a_b = tile_b * tile_n * 4                          # f32 accumulator scratch
    need = x_b + w_b + b_b + o_b + a_b
    # 2x headroom + 4 MiB; floor 32 MiB, cap well under v7x's 64 MiB/TC.
    return int(min(max(2 * need + (4 << 20), 32 << 20), 56 << 20))


def noisy_linear_forward(x, params, training=True,
                         tile_b=256, tile_n=256, tile_k=512):
    """NoisyLinear forward: y = x @ W^T + b (W, b noisy when training)."""
    batch, in_features = x.shape
    assert in_features == params["in_features"]
    out_features = params["out_features"]
    f_pad, c_pad = params["weight_mu_t"].shape
    cdt = params["weight_mu_t"].dtype                  # compute dtype (bf16)

    tile_n = _pick_tile(c_pad, tile_n)
    tile_k = _pick_tile(f_pad, tile_k)
    tile_b = min(_round_up(tile_b, _SUBLANE), _round_up(batch, _SUBLANE))
    b_pad = _round_up(batch, tile_b)

    # v7x megacore: if neither the batch nor the N axis has >1 tile, split the
    # batch so both TensorCores get work (no-op on single-TC v5e/v6e).
    if b_pad // tile_b == 1 and c_pad // tile_n == 1 and b_pad >= 2 * _SUBLANE:
        tile_b = _round_up(-(-batch // 2), _SUBLANE)
        b_pad = _round_up(batch, tile_b)

    grid = (b_pad // tile_b, c_pad // tile_n, f_pad // tile_k)

    # Skip the padding copy when the input is already tile-aligned.
    if batch == b_pad and in_features == f_pad:
        x_p = x.astype(cdt)
    else:
        x_p = (jnp.zeros((b_pad, f_pad), cdt)
               .at[:batch, :in_features].set(x.astype(cdt)))

    x_spec = pl.BlockSpec((tile_b, tile_k), lambda i, j, k: (i, k))
    w_spec = pl.BlockSpec((tile_k, tile_n), lambda i, j, k: (k, j))
    bias_spec = pl.BlockSpec((1, tile_n), lambda i, j, k: (0, j))
    o_spec = pl.BlockSpec((tile_b, tile_n), lambda i, j, k: (i, j))

    if training:
        kernel = _noisy_linear_kernel
        operands = (x_p, params["weight_mu_t"], params["weight_sigma_t"],
                    params["weight_eps_t"], params["bias_mu_p"],
                    params["bias_sigma_p"], params["bias_eps_p"])
        in_specs = [x_spec, w_spec, w_spec, w_spec,
                    bias_spec, bias_spec, bias_spec]
        n_w, n_bias = 3, 3
    else:
        kernel = _plain_linear_kernel
        operands = (x_p, params["weight_mu_t"], params["bias_mu_p"])
        in_specs = [x_spec, w_spec, bias_spec]
        n_w, n_bias = 1, 1

    vmem_limit = _vmem_limit_bytes(tile_b, tile_k, tile_n, n_w, n_bias,
                                   jnp.dtype(cdt).itemsize,
                                   jnp.dtype(cdt).itemsize)

    out = pl.pallas_call(
        kernel,
        out_shape=jax.ShapeDtypeStruct((b_pad, c_pad), jnp.float32),
        grid=grid,
        in_specs=in_specs,
        out_specs=o_spec,
        scratch_shapes=[pltpu.VMEM((tile_b, tile_n), jnp.float32)],
        compiler_params=pltpu.CompilerParams(
            dimension_semantics=("parallel", "parallel", "arbitrary"),
            vmem_limit_bytes=vmem_limit),
    )(*operands)
    return out[:batch, :out_features]


if __name__ == "__main__":
    key = jax.random.PRNGKey(0)

    def check(batch, in_features, out_features, k_p, k_x):
        params = init_noisy_linear(k_p, in_features, out_features, std_init=0.4)
        x = jax.random.normal(k_x, (batch, in_features), dtype=jnp.float32)

        out_train = jax.block_until_ready(
            noisy_linear_forward(x, params, training=True))
        out_eval = jax.block_until_ready(
            noisy_linear_forward(x, params, training=False))

        # Reference (f32, HIGHEST precision) built from the same bf16-rounded
        # params / input the kernel consumes, so the comparison measures the
        # kernel rather than bf16 storage rounding.
        f32 = lambda a: a.astype(jnp.float32)
        bf = lambda a: f32(a.astype(jnp.bfloat16))
        hi = jax.lax.Precision.HIGHEST
        x_r = bf(x)
        w_noisy = f32((bf(params["weight_mu"])
                       + bf(params["weight_sigma"]) * bf(params["weight_eps"])
                       ).astype(jnp.bfloat16))
        b_noisy = (bf(params["bias_mu"])
                   + bf(params["bias_sigma"]) * bf(params["bias_eps"]))
        ref_train = jnp.dot(x_r, w_noisy.T, precision=hi) + b_noisy
        ref_eval = (jnp.dot(x_r, bf(params["weight_mu"]).T, precision=hi)
                    + bf(params["bias_mu"]))

        assert out_train.shape == (batch, out_features)
        assert out_eval.shape == (batch, out_features)
        assert jnp.allclose(out_train, ref_train, atol=5e-3, rtol=5e-3), (
            "train mismatch", float(jnp.max(jnp.abs(out_train - ref_train))))
        assert jnp.allclose(out_eval, ref_eval, atol=5e-3, rtol=5e-3), (
            "eval mismatch", float(jnp.max(jnp.abs(out_eval - ref_eval))))

    k1, k2, k3, k4 = jax.random.split(key, 4)
    check(2, 32, 5, k1, k2)        # tiny layer: single grid point
    check(40, 520, 130, k3, k4)    # exercises B-split + K-accumulator tiling
    print("KERNEL_OK")
</pallas_src>

<mosaic_0001>
module attributes {stable_mosaic.version = 11 : i64} {
  func.func @_noisy_linear_kernel(%arg0: i32, %arg1: i32, %arg2: i32, %arg3: memref<8x128xbf16, #tpu.memory_space<vmem>>, %arg4: memref<128x128xbf16, #tpu.memory_space<vmem>>, %arg5: memref<128x128xbf16, #tpu.memory_space<vmem>>, %arg6: memref<128x128xbf16, #tpu.memory_space<vmem>>, %arg7: memref<1x128xbf16, #tpu.memory_space<vmem>>, %arg8: memref<1x128xbf16, #tpu.memory_space<vmem>>, %arg9: memref<1x128xbf16, #tpu.memory_space<vmem>>, %arg10: memref<8x128xf32, #tpu.memory_space<vmem>>, %arg11: memref<8x128xf32, #tpu.memory_space<vmem>>) attributes {dimension_semantics = [#tpu.dimension_semantics<parallel>, #tpu.dimension_semantics<parallel>, #tpu.dimension_semantics<arbitrary>], iteration_bounds = array<i64: 1, 1, 1>, scalar_prefetch = 0 : i64, scratch_operands = 1 : i64, tpu.core_type = #tpu.core_type<tc>, window_params = [{transform_indices = @transform_0, window_bounds = array<i64: 8, 128>}, {transform_indices = @transform_1, window_bounds = array<i64: 128, 128>}, {transform_indices = @transform_2, window_bounds = array<i64: 128, 128>}, {transform_indices = @transform_3, window_bounds = array<i64: 128, 128>}, {transform_indices = @transform_4, window_bounds = array<i64: 1, 128>}, {transform_indices = @transform_5, window_bounds = array<i64: 1, 128>}, {transform_indices = @transform_6, window_bounds = array<i64: 1, 128>}, {transform_indices = @transform_7, window_bounds = array<i64: 8, 128>}]} {
    %c0_i32 = arith.constant 0 : i32
    %0 = arith.cmpi eq, %arg2, %c0_i32 : i32
    %1 = arith.extui %0 : i1 to i32
    %c0_i32_0 = arith.constant 0 : i32
    %2 = arith.cmpi ne, %1, %c0_i32_0 : i32
    scf.if %2 {
      %cst_14 = arith.constant 0.000000e+00 : f32
      %20 = vector.broadcast %cst_14 : f32 to vector<8x128xf32>
      %c0_15 = arith.constant 0 : index
      %c0_16 = arith.constant 0 : index
      %21 = vector.load %arg11[%c0_15, %c0_16] : memref<8x128xf32, #tpu.memory_space<vmem>>, vector<8x128xf32>
      tpu.vector_store %arg11[%c0_15, %c0_16], %20 {strides = array<i32>} : memref<8x128xf32, #tpu.memory_space<vmem>>, vector<8x128xf32>,
    } else {
    }
    %c0 = arith.constant 0 : index
    %c0_1 = arith.constant 0 : index
    %3 = vector.load %arg4[%c0, %c0_1] : memref<128x128xbf16, #tpu.memory_space<vmem>>, vector<128x128xbf16>
    %4 = arith.extf %3 : vector<128x128xbf16> to vector<128x128xf32>
    %c0_2 = arith.constant 0 : index
    %c0_3 = arith.constant 0 : index
    %5 = vector.load %arg5[%c0_2, %c0_3] : memref<128x128xbf16, #tpu.memory_space<vmem>>, vector<128x128xbf16>
    %6 = arith.extf %5 : vector<128x128xbf16> to vector<128x128xf32>
    %c0_4 = arith.constant 0 : index
    %c0_5 = arith.constant 0 : index
    %7 = vector.load %arg6[%c0_4, %c0_5] : memref<128x128xbf16, #tpu.memory_space<vmem>>, vector<128x128xbf16>
    %8 = arith.extf %7 : vector<128x128xbf16> to vector<128x128xf32>
    %9 = arith.mulf %6, %8 : vector<128x128xf32>
    %10 = arith.addf %4, %9 : vector<128x128xf32>
    %c0_6 = arith.constant 0 : index
    %c0_7 = arith.constant 0 : index
    %11 = vector.load %arg11[%c0_6, %c0_7] : memref<8x128xf32, #tpu.memory_space<vmem>>, vector<8x128xf32>
    %c0_8 = arith.constant 0 : index
    %c0_9 = arith.constant 0 : index
    %12 = vector.load %arg3[%c0_8, %c0_9] : memref<8x128xbf16, #tpu.memory_space<vmem>>, vector<8x128xbf16>
    %13 = arith.truncf %10 : vector<128x128xf32> to vector<128x128xbf16>
    %cst = arith.constant dense<0.000000e+00> : vector<8x128xf32>
    %14 = tpu.matmul %12, %13, %cst {dimension_numbers = #tpu.dot_dimension_numbers<[1], [0], [0], [1], [0, 0, 1, 1], [], []>} : vector<8x128xbf16>, vector<128x128xbf16>, vector<8x128xf32> -> vector<8x128xf32>
    %15 = arith.addf %11, %14 : vector<8x128xf32>
    %c0_10 = arith.constant 0 : index
    %c0_11 = arith.constant 0 : index
    %16 = vector.load %arg11[%c0_10, %c0_11] : memref<8x128xf32, #tpu.memory_space<vmem>>, vector<8x128xf32>
    tpu.vector_store %arg11[%c0_10, %c0_11], %15 {strides = array<i32>} : memref<8x128xf32, #tpu.memory_space<vmem>>, vector<8x128xf32>,
    %c0_i32_12 = arith.constant 0 : i32
    %17 = arith.cmpi eq, %arg2, %c0_i32_12 : i32
    %18 = arith.extui %17 : i1 to i32
    %c0_i32_13 = arith.constant 0 : i32
    %19 = arith.cmpi ne, %18, %c0_i32_13 : i32
    scf.if %19 {
      %c0_14 = arith.constant 0 : index
      %c0_15 = arith.constant 0 : index
      %20 = vector.load %arg7[%c0_14, %c0_15] : memref<1x128xbf16, #tpu.memory_space<vmem>>, vector<1x128xbf16>
      %21 = arith.extf %20 : vector<1x128xbf16> to vector<1x128xf32>
      %c0_16 = arith.constant 0 : index
      %c0_17 = arith.constant 0 : index
      %22 = vector.load %arg8[%c0_16, %c0_17] : memref<1x128xbf16, #tpu.memory_space<vmem>>, vector<1x128xbf16>
      %23 = arith.extf %22 : vector<1x128xbf16> to vector<1x128xf32>
      %c0_18 = arith.constant 0 : index
      %c0_19 = arith.constant 0 : index
      %24 = vector.load %arg9[%c0_18, %c0_19] : memref<1x128xbf16, #tpu.memory_space<vmem>>, vector<1x128xbf16>
      %25 = arith.extf %24 : vector<1x128xbf16> to vector<1x128xf32>
      %26 = arith.mulf %23, %25 : vector<1x128xf32>
      %27 = arith.addf %21, %26 : vector<1x128xf32>
      %c0_20 = arith.constant 0 : index
      %c0_21 = arith.constant 0 : index
      %28 = vector.load %arg11[%c0_20, %c0_21] : memref<8x128xf32, #tpu.memory_space<vmem>>, vector<8x128xf32>
      %29 = vector.broadcast %27 : vector<1x128xf32> to vector<8x128xf32>
      %30 = arith.addf %28, %29 : vector<8x128xf32>
      %c0_22 = arith.constant 0 : index
      %c0_23 = arith.constant 0 : index
      %31 = vector.load %arg10[%c0_22, %c0_23] : memref<8x128xf32, #tpu.memory_space<vmem>>, vector<8x128xf32>
      tpu.vector_store %arg10[%c0_22, %c0_23], %30 {strides = array<i32>} : memref<8x128xf32, #tpu.memory_space<vmem>>, vector<8x128xf32>,
    } else {
    }
    return
  }
  func.func @transform_0(%arg0: i32, %arg1: i32, %arg2: i32) -> (i32, i32) {
    %c0_i32 = arith.constant 0 : i32
    return %arg0, %arg2 : i32, i32
  }
  func.func @transform_1(%arg0: i32, %arg1: i32, %arg2: i32) -> (i32, i32) {
    %c0_i32 = arith.constant 0 : i32
    return %arg2, %arg1 : i32, i32
  }
  func.func @transform_2(%arg0: i32, %arg1: i32, %arg2: i32) -> (i32, i32) {
    %c0_i32 = arith.constant 0 : i32
    return %arg2, %arg1 : i32, i32
  }
  func.func @transform_3(%arg0: i32, %arg1: i32, %arg2: i32) -> (i32, i32) {
    %c0_i32 = arith.constant 0 : i32
    return %arg2, %arg1 : i32, i32
  }
  func.func @transform_4(%arg0: i32, %arg1: i32, %arg2: i32) -> (i32, i32) {
    %c0_i32 = arith.constant 0 : i32
    %c0_i32_0 = arith.constant 0 : i32
    return %c0_i32, %arg1 : i32, i32
  }
  func.func @transform_5(%arg0: i32, %arg1: i32, %arg2: i32) -> (i32, i32) {
    %c0_i32 = arith.constant 0 : i32
    %c0_i32_0 = arith.constant 0 : i32
    return %c0_i32, %arg1 : i32, i32
  }
  func.func @transform_6(%arg0: i32, %arg1: i32, %arg2: i32) -> (i32, i32) {
    %c0_i32 = arith.constant 0 : i32
    %c0_i32_0 = arith.constant 0 : i32
    return %c0_i32, %arg1 : i32, i32
  }
  func.func @transform_7(%arg0: i32, %arg1: i32, %arg2: i32) -> (i32, i32) {
    %c0_i32 = arith.constant 0 : i32
    return %arg0, %arg1 : i32, i32
  }
}

</mosaic_0001>

<llo_original>
// kernel: tpu_custom_call.1
$region0: #{tpu_custom_call.1}
  #allocation0 [shape = 'u32[]', space=smem, size = 0x4, offset = 0x4, fixed_abs, tag = 'smem constant byte address 0x4 - core index']
  #allocation1 [shape = 'u32[144,128]{1,0:T(1,128)}', space=vmem, size = 0x12000, scoped, tag = 'internal scratch']
  #allocation2 [shape = 'f32[8,128]{1,0:T(8,128)}', space=vmem, size = 0x1000, scoped, tag = 'scratch operand']
  %s0 = inlined_call_operand.hbm [shape: bf16[8,128], index: 0, kind: input, shape index: {}]
  %s1 = inlined_call_operand.hbm [shape: bf16[128,128], index: 1, kind: input, shape index: {}]
  %s2 = inlined_call_operand.hbm [shape: bf16[128,128], index: 2, kind: input, shape index: {}]
  %s3 = inlined_call_operand.hbm [shape: bf16[128,128], index: 3, kind: input, shape index: {}]
  %s4 = inlined_call_operand.vmem [shape: bf16[1,128], index: 4, kind: input, shape index: {}]
  %s5 = inlined_call_operand.vmem [shape: bf16[1,128], index: 5, kind: input, shape index: {}]
  %s6 = inlined_call_operand.vmem [shape: bf16[1,128], index: 6, kind: input, shape index: {}]
  %s7 = inlined_call_operand.hbm [shape: f32[8,128], index: 7, kind: output, shape index: {}]
  %s8 = sld [smem:[#allocation0]]
  $region62: #{tpu_custom_call.1} parent=0
    _
  %s10 = ssub.s32 1, %s8
  %s11 = scalar_select 0, %s10, %s8
  $region1: #{tpu_custom_call.1} parent=0
    #allocation3 [shape = 'u8[2048]{0}', space=vmem, size = 0x800, scoped, tag = 'input window, operand 0, single buffered']
    #allocation4 [shape = 's32[1]{0}', space=sflag, size = 0x4, scoped, tag = 'scoped memory for tpu_custom_call.1']
    #allocation5 [shape = 's32[1]{0}', space=sflag, size = 0x4, scoped, tag = 'scoped memory for tpu_custom_call.1']
    #allocation6 [shape = 'u8[32768]{0}', space=vmem, size = 0x8000, scoped, tag = 'input window, operand 1, single buffered']
    #allocation7 [shape = 's32[1]{0}', space=sflag, size = 0x4, scoped, tag = 'scoped memory for tpu_custom_call.1']
    #allocation8 [shape = 'u8[32768]{0}', space=vmem, size = 0x8000, scoped, tag = 'input window, operand 2, single buffered']
    #allocation9 [shape = 'u8[32768]{0}', space=vmem, size = 0x8000, scoped, tag = 'input window, operand 3, single buffered']
    #allocation10 [shape = 's32[1]{0}', space=sflag, size = 0x4, scoped, tag = 'scoped memory for tpu_custom_call.1']
    #allocation11 [shape = 'u8[4096]{0}', space=vmem, size = 0x1000, scoped, tag = 'output window, operand 0, single buffered']
    %12 = vsyncpa [#allocation4], 0
    %13 = vsyncpa [#allocation7], 0
    %14 = vsyncpa [#allocation10], 0
    %15 = vsyncpa [#allocation5], 0
    // Predicated region
    $region2: #{tpu_custom_call.1} parent=1 // pred_check
      _
    $region3: #{tpu_custom_call.1} parent=1 // pred_check_branch
      %17 = sbr.rel (0) target = $region5
    $region4: #{tpu_custom_call.1} parent=1 // pred_region
      %s19 = ssub.s32 64, 64
      %20 = vsyncadd [#allocation4], %s19
      %s22 = sshll.u32 [#allocation3], 4
      %s23 = int_to_ptr.vmem [resolvable:$true] %s22
      %25 = dma.hbm_to_vmem [thread:$0]  %s0, 64, %s23, [#allocation4]
    $region5: #{tpu_custom_call.1} parent=1 // pred_fallthru
      _
    // Predicated region
    $region6: #{tpu_custom_call.1} parent=1 // pred_check
      _
    $region7: #{tpu_custom_call.1} parent=1 // pred_check_branch
      %27 = sbr.rel (0) target = $region9
    $region8: #{tpu_custom_call.1} parent=1 // pred_region
      %s29 = ssub.s32 1024, 1024
      %30 = vsyncadd [#allocation7], %s29
      %s31 = sshll.u32 [#allocation6], 4
      %s32 = int_to_ptr.vmem [resolvable:$true] %s31
      %37 = dma.hbm_to_vmem [thread:$0]  %s1, 1024, %s32, [#allocation7], 64, 64, 4
    $region9: #{tpu_custom_call.1} parent=1 // pred_fallthru
      _
    // Predicated region
    $region10: #{tpu_custom_call.1} parent=1 // pred_check
      _
    $region11: #{tpu_custom_call.1} parent=1 // pred_check_branch
      %39 = sbr.rel (0) target = $region13
    $region12: #{tpu_custom_call.1} parent=1 // pred_region
      %s41 = ssub.s32 1024, 1024
      %42 = vsyncadd [#allocation7], %s41
      %s43 = sshll.u32 [#allocation8], 4
      %s44 = int_to_ptr.vmem [resolvable:$true] %s43
      %49 = dma.hbm_to_vmem [thread:$0]  %s2, 1024, %s44, [#allocation7], 64, 64, 4
    $region13: #{tpu_custom_call.1} parent=1 // pred_fallthru
      _
    // Predicated region
    $region14: #{tpu_custom_call.1} parent=1 // pred_check
      _
    $region15: #{tpu_custom_call.1} parent=1 // pred_check_branch
      %51 = sbr.rel (0) target = $region17
    $region16: #{tpu_custom_call.1} parent=1 // pred_region
      %s53 = ssub.s32 1024, 1024
      %54 = vsyncadd [#allocation10], %s53
      %s55 = sshll.u32 [#allocation9], 4
      %s56 = int_to_ptr.vmem [resolvable:$true] %s55
      %61 = dma.hbm_to_vmem [thread:$0]  %s3, 1024, %s56, [#allocation10], 64, 64, 4
    $region17: #{tpu_custom_call.1} parent=1 // pred_fallthru
      _
    // Predicated region
    $region18: #{tpu_custom_call.1} parent=1 // pred_check
      _
    $region19: #{tpu_custom_call.1} parent=1 // pred_check_branch
      %63 = sbr.rel (0) target = $region21
    $region20: #{tpu_custom_call.1} parent=1 // pred_region
      _
    $region21: #{tpu_custom_call.1} parent=1 // pred_fallthru
      _
    // Predicated region
    $region22: #{tpu_custom_call.1} parent=1 // pred_check
      _
    $region23: #{tpu_custom_call.1} parent=1 // pred_check_branch
      %65 = sbr.rel (0) target = $region25
    $region24: #{tpu_custom_call.1} parent=1 // pred_region
      _
    $region25: #{tpu_custom_call.1} parent=1 // pred_fallthru
      _
    // Predicated region
    $region26: #{tpu_custom_call.1} parent=1 // pred_check
      _
    $region27: #{tpu_custom_call.1} parent=1 // pred_check_branch
      %67 = sbr.rel (0) target = $region29
    $region28: #{tpu_custom_call.1} parent=1 // pred_region
      _
    $region29: #{tpu_custom_call.1} parent=1 // pred_fallthru
      _
    // Predicated region
    $region30: #{tpu_custom_call.1} parent=1 // pred_check
      _
    $region31: #{tpu_custom_call.1} parent=1 // pred_check_branch
      %69 = sbr.rel (0) target = $region33
    $region32: #{tpu_custom_call.1} parent=1 // pred_region
      %70 = dma.done [#allocation4], 64
    $region33: #{tpu_custom_call.1} parent=1 // pred_fallthru
      _
    // Predicated region
    $region34: #{tpu_custom_call.1} parent=1 // pred_check
      _
    $region35: #{tpu_custom_call.1} parent=1 // pred_check_branch
      %72 = sbr.rel (0) target = $region37
    $region36: #{tpu_custom_call.1} parent=1 // pred_region
      %73 = dma.done [#allocation7], 1024
    $region37: #{tpu_custom_call.1} parent=1 // pred_fallthru
      _
    // Predicated region
    $region38: #{tpu_custom_call.1} parent=1 // pred_check
      _
    $region39: #{tpu_custom_call.1} parent=1 // pred_check_branch
      %75 = sbr.rel (0) target = $region41
    $region40: #{tpu_custom_call.1} parent=1 // pred_region
      %76 = dma.done [#allocation7], 1024
    $region41: #{tpu_custom_call.1} parent=1 // pred_fallthru
      _
    // Predicated region
    $region42: #{tpu_custom_call.1} parent=1 // pred_check
      _
    $region43: #{tpu_custom_call.1} parent=1 // pred_check_branch
      %78 = sbr.rel (0) target = $region45
    $region44: #{tpu_custom_call.1} parent=1 // pred_region
      %79 = dma.done [#allocation10], 1024
    $region45: #{tpu_custom_call.1} parent=1 // pred_fallthru
      _
    %p81 = scmp.eq.s32.totalorder 0, 0
    // Predicated region
    $region46: #{tpu_custom_call.1} parent=1 // pred_check
      %p82 = pneg %p81
    $region47: #{tpu_custom_call.1} parent=1 // pred_check_branch
      %84 = sbr.rel (%p82) target = $region49
    $region48: #{tpu_custom_call.1} parent=1 // pred_region
      %85 = vst [vmem:[#allocation2] sm:$0xff] 0.0
    $region49: #{tpu_custom_call.1} parent=1 // pred_fallthru
      _
    %v86 = vld [vmem:[#allocation6] sm:$0xf]
    %v87 = vld [vmem:[#allocation6 + $0x4] sm:$0xf]
    %v88 = vld [vmem:[#allocation6 + $0x8] sm:$0xf]
    %v89 = vld [vmem:[#allocation6 + $0xc] sm:$0xf]
    %v90 = vld [vmem:[#allocation6 + $0x10] sm:$0xf]
    %v91 = vld [vmem:[#allocation6 + $0x14] sm:$0xf]
    %v92 = vld [vmem:[#allocation6 + $0x18] sm:$0xf]
    %v93 = vld [vmem:[#allocation6 + $0x1c] sm:$0xf]
    %v94 = vld [vmem:[#allocation6 + $0x20] sm:$0xf]
    %v95 = vld [vmem:[#allocation6 + $0x24] sm:$0xf]
    %v96 = vld [vmem:[#allocation6 + $0x28] sm:$0xf]
    %v97 = vld [vmem:[#allocation6 + $0x2c] sm:$0xf]
    %v98 = vld [vmem:[#allocation6 + $0x30] sm:$0xf]
    %v99 = vld [vmem:[#allocation6 + $0x34] sm:$0xf]
    %v100 = vld [vmem:[#allocation6 + $0x38] sm:$0xf]
    %v101 = vld [vmem:[#allocation6 + $0x3c] sm:$0xf]
    %v102 = vunpack.c.l.bf16 %v86
    %v103 = vunpack.c.l.bf16 %v87
    %v104 = vunpack.c.l.bf16 %v88
    %v105 = vunpack.c.l.bf16 %v89
    %v106 = vunpack.c.l.bf16 %v90
    %v107 = vunpack.c.l.bf16 %v91
    %v108 = vunpack.c.l.bf16 %v92
    %v109 = vunpack.c.l.bf16 %v93
    %v110 = vunpack.c.l.bf16 %v94
    %v111 = vunpack.c.l.bf16 %v95
    %v112 = vunpack.c.l.bf16 %v96
    %v113 = vunpack.c.l.bf16 %v97
    %v114 = vunpack.c.l.bf16 %v98
    %v115 = vunpack.c.l.bf16 %v99
    %v116 = vunpack.c.l.bf16 %v100
    %v117 = vunpack.c.l.bf16 %v101
    %v118 = vld [vmem:[#allocation8] sm:$0xf]
    %v119 = vld [vmem:[#allocation8 + $0x4] sm:$0xf]
    %v120 = vld [vmem:[#allocation8 + $0x8] sm:$0xf]
    %v121 = vld [vmem:[#allocation8 + $0xc] sm:$0xf]
    %v122 = vld [vmem:[#allocation8 + $0x10] sm:$0xf]
    %v123 = vld [vmem:[#allocation8 + $0x14] sm:$0xf]
    %v124 = vld [vmem:[#allocation8 + $0x18] sm:$0xf]
    %v125 = vld [vmem:[#allocation8 + $0x1c] sm:$0xf]
    %v126 = vld [vmem:[#allocation8 + $0x20] sm:$0xf]
    %v127 = vld [vmem:[#allocation8 + $0x24] sm:$0xf]
    %v128 = vld [vmem:[#allocation8 + $0x28] sm:$0xf]
    %v129 = vld [vmem:[#allocation8 + $0x2c] sm:$0xf]
    %v130 = vld [vmem:[#allocation8 + $0x30] sm:$0xf]
    %v131 = vld [vmem:[#allocation8 + $0x34] sm:$0xf]
    %v132 = vld [vmem:[#allocation8 + $0x38] sm:$0xf]
    %v133 = vld [vmem:[#allocation8 + $0x3c] sm:$0xf]
    %v134 = vunpack.c.l.bf16 %v118
    %v135 = vunpack.c.l.bf16 %v119
    %v136 = vunpack.c.l.bf16 %v120
    %v137 = vunpack.c.l.bf16 %v121
    %v138 = vunpack.c.l.bf16 %v122
    %v139 = vunpack.c.l.bf16 %v123
    %v140 = vunpack.c.l.bf16 %v124
    %v141 = vunpack.c.l.bf16 %v125
    %v142 = vunpack.c.l.bf16 %v126
    %v143 = vunpack.c.l.bf16 %v127
    %v144 = vunpack.c.l.bf16 %v128
    %v145 = vunpack.c.l.bf16 %v129
    %v146 = vunpack.c.l.bf16 %v130
    %v147 = vunpack.c.l.bf16 %v131
    %v148 = vunpack.c.l.bf16 %v132
    %v149 = vunpack.c.l.bf16 %v133
    %v150 = vld [vmem:[#allocation9] sm:$0xf]
    %v151 = vld [vmem:[#allocation9 + $0x4] sm:$0xf]
    %v152 = vld [vmem:[#allocation9 + $0x8] sm:$0xf]
    %v153 = vld [vmem:[#allocation9 + $0xc] sm:$0xf]
    %v154 = vld [vmem:[#allocation9 + $0x10] sm:$0xf]
    %v155 = vld [vmem:[#allocation9 + $0x14] sm:$0xf]
    %v156 = vld [vmem:[#allocation9 + $0x18] sm:$0xf]
    %v157 = vld [vmem:[#allocation9 + $0x1c] sm:$0xf]
    %v158 = vld [vmem:[#allocation9 + $0x20] sm:$0xf]
    %v159 = vld [vmem:[#allocation9 + $0x24] sm:$0xf]
    %v160 = vld [vmem:[#allocation9 + $0x28] sm:$0xf]
    %v161 = vld [vmem:[#allocation9 + $0x2c] sm:$0xf]
    %v162 = vld [vmem:[#allocation9 + $0x30] sm:$0xf]
    %v163 = vld [vmem:[#allocation9 + $0x34] sm:$0xf]
    %v164 = vld [vmem:[#allocation9 + $0x38] sm:$0xf]
    %v165 = vld [vmem:[#allocation9 + $0x3c] sm:$0xf]
    %v166 = vunpack.c.l.bf16 %v150
    %v167 = vunpack.c.l.bf16 %v151
    %v168 = vunpack.c.l.bf16 %v152
    %v169 = vunpack.c.l.bf16 %v153
    %v170 = vunpack.c.l.bf16 %v154
    %v171 = vunpack.c.l.bf16 %v155
    %v172 = vunpack.c.l.bf16 %v156
    %v173 = vunpack.c.l.bf16 %v157
    %v174 = vunpack.c.l.bf16 %v158
    %v175 = vunpack.c.l.bf16 %v159
    %v176 = vunpack.c.l.bf16 %v160
    %v177 = vunpack.c.l.bf16 %v161
    %v178 = vunpack.c.l.bf16 %v162
    %v179 = vunpack.c.l.bf16 %v163
    %v180 = vunpack.c.l.bf16 %v164
    %v181 = vunpack.c.l.bf16 %v165
    %v182 = vmul.f32 %v134, %v166
    %v183 = vmul.f32 %v135, %v167
    %v184 = vmul.f32 %v136, %v168
    %v185 = vmul.f32 %v137, %v169
    %v186 = vmul.f32 %v138, %v170
    %v187 = vmul.f32 %v139, %v171
    %v188 = vmul.f32 %v140, %v172
    %v189 = vmul.f32 %v141, %v173
    %v190 = vmul.f32 %v142, %v174
    %v191 = vmul.f32 %v143, %v175
    %v192 = vmul.f32 %v144, %v176
    %v193 = vmul.f32 %v145, %v177
    %v194 = vmul.f32 %v146, %v178
    %v195 = vmul.f32 %v147, %v179
    %v196 = vmul.f32 %v148, %v180
    %v197 = vmul.f32 %v149, %v181
    %v198 = vadd.f32 %v102, %v182
    %v199 = vadd.f32 %v103, %v183
    %v200 = vadd.f32 %v104, %v184
    %v201 = vadd.f32 %v105, %v185
    %v202 = vadd.f32 %v106, %v186
    %v203 = vadd.f32 %v107, %v187
    %v204 = vadd.f32 %v108, %v188
    %v205 = vadd.f32 %v109, %v189
    %v206 = vadd.f32 %v110, %v190
    %v207 = vadd.f32 %v111, %v191
    %v208 = vadd.f32 %v112, %v192
    %v209 = vadd.f32 %v113, %v193
    %v210 = vadd.f32 %v114, %v194
    %v211 = vadd.f32 %v115, %v195
    %v212 = vadd.f32 %v116, %v196
    %v213 = vadd.f32 %v117, %v197
    %v214 = vld [vmem:[#allocation2] sm:$0xff]
    %v215 = vld [vmem:[#allocation3] sm:$0xf]
    %v216 = vpack.c.bf16 %v199, %v198
    %v217 = vpack.c.bf16 %v201, %v200
    %v218 = vpack.c.bf16 %v203, %v202
    %v219 = vpack.c.bf16 %v205, %v204
    %v220 = vpack.c.bf16 %v207, %v206
    %v221 = vpack.c.bf16 %v209, %v208
    %v222 = vpack.c.bf16 %v211, %v210
    %v223 = vpack.c.bf16 %v213, %v212
    %224 = vmatprep.subr.bf16.mxu0 0
    %225 = vmatpush1.bf16.msra.mxu0 %v216
    %226 = vmatprep.subr.bf16.mxu0 0
    %227 = vmatpush1.bf16.msra.mxu0 %v217
    %228 = vmatprep.subr.bf16.mxu0 0
    %229 = vmatpush1.bf16.msra.mxu0 %v218
    %230 = vmatprep.subr.bf16.mxu0 0
    %231 = vmatpush1.bf16.msra.mxu0 %v219
    %232 = vmatprep.subr.bf16.mxu0 0
    %233 = vmatpush1.bf16.msra.mxu0 %v220
    %234 = vmatprep.subr.bf16.mxu0 0
    %235 = vmatpush1.bf16.msra.mxu0 %v221
    %236 = vmatprep.subr.bf16.mxu0 0
    %237 = vmatpush1.bf16.msra.mxu0 %v222
    %238 = vmatprep.subr.bf16.mxu0 0
    %239 = vmatpush1.bf16.msra.mxu0 %v223
    %240 = vmatprep.subr.bf16.mxu0 0
    %241 = vmatpush1.bf16.msra.mxu0 0
    %242 = vmatprep.subr.bf16.mxu0 0
    %243 = vmatpush1.bf16.msra.mxu0 0
    %244 = vmatprep.subr.bf16.mxu0 0
    %245 = vmatpush1.bf16.msra.mxu0 0
    %246 = vmatprep.subr.bf16.mxu0 0
    %247 = vmatpush1.bf16.msra.mxu0 0
    %248 = vmatprep.subr.bf16.mxu0 0
    %249 = vmatpush1.bf16.msra.mxu0 0
    %250 = vmatprep.subr.bf16.mxu0 0
    %251 = vmatpush1.bf16.msra.mxu0 0
    %252 = vmatprep.subr.bf16.mxu0 0
    %253 = vmatpush1.bf16.msra.mxu0 0
    %254 = vmatprep.subr.bf16.mxu0 0
    %255 = vmatpush1.bf16.msra.mxu0 0
    %256 = vmatprep.mubr.bf16.mxu0 0
    %257 = vmatmul.mubr.bf16.gmra.mrb[0].mxu0 %v215
    %v258 = vpop.f32.mrb[0].mxu0
    %v259 = vadd.f32 0.0, %v258
    %v260 = vpop.f32.mrb[0].mxu0
    %v261 = vpop.f32.mrb[0].mxu0
    %v262 = vpop.f32.mrb[0].mxu0
    %263 = vdwg.mxu0
    %v264 = vadd.f32 %v214, %v259
    %265 = vst [vmem:[#allocation2] sm:$0xff] %v264
    // Predicated region
    $region50: #{tpu_custom_call.1} parent=1 // pred_check
      %p266 = pneg %p81
    $region51: #{tpu_custom_call.1} parent=1 // pred_check_branch
      %268 = sbr.rel (%p266) target = $region53
    $region52: #{tpu_custom_call.1} parent=1 // pred_region
      %v269 = vld [vmem:[%s4] sm:$0x1]
      %v270 = vunpack.c.l.bf16 %v269
      %v271 = vld [vmem:[%s5] sm:$0x1]
      %v272 = vunpack.c.l.bf16 %v271
      %v273 = vld [vmem:[%s6] sm:$0x1]
      %v274 = vunpack.c.l.bf16 %v273
      %v275 = vmul.f32 %v272, %v274
      %v276 = vadd.f32 %v270, %v275
      %v277 = vld [vmem:[#allocation2] sm:$0xff]
      %v278 = vlaneseq
      %v279 = vshrl.u32 %v278, 7
      %v280 = vsub.s32 0, %v279
      %v281 = vrot.slane %v276, %v280
      %v282 = vadd.f32 %v277, %v281
      %283 = vst [vmem:[#allocation11] sm:$0xff] %v282
    $region53: #{tpu_custom_call.1} parent=1 // pred_fallthru
      _
    // Predicated region
    $region54: #{tpu_custom_call.1} parent=1 // pred_check
      _
    $region55: #{tpu_custom_call.1} parent=1 // pred_check_branch
      %285 = sbr.rel (0) target = $region57
    $region56: #{tpu_custom_call.1} parent=1 // pred_region
      %s287 = ssub.s32 128, 128
      %288 = vsyncadd [#allocation5], %s287
      %s290 = sshll.u32 [#allocation11], 4
      %s291 = int_to_ptr.vmem [resolvable:$true] %s290
      %293 = dma.vmem_to_hbm [thread:$0]  %s291, 128, %s7, [#allocation5]
    $region57: #{tpu_custom_call.1} parent=1 // pred_fallthru
      _
    // Predicated region
    $region58: #{tpu_custom_call.1} parent=1 // pred_check
      _
    $region59: #{tpu_custom_call.1} parent=1 // pred_check_branch
      %295 = sbr.rel (0) target = $region61
    $region60: #{tpu_custom_call.1} parent=1 // pred_region
      %296 = dma.done [#allocation5], 128
    $region61: #{tpu_custom_call.1} parent=1 // pred_fallthru
      _
    %297 = vsyncpa [#allocation4], 1
    %298 = vsyncpa [#allocation7], 1
    %299 = vsyncpa [#allocation10], 1
    %300 = vsyncpa [#allocation5], 1

</llo_original>
